<compile_context>
chip_gen: v7x
topology: tpu7x:2x2x1
jax: 0.10.0
libtpu: 0.0.40
codegen_flags: <defaults>
</compile_context>

<pallas_src>
import jax
import jax.numpy as jnp
from jax.experimental import pallas as pl
from jax.experimental.pallas import tpu as pltpu


def mlp_kernel(x_ref, w12_ref, b12_ref, w3_ref, b3_ref, o_ref):
    # Fused Linear(n_inputs, 20) @ Linear(20, 10):  x @ W12 + b12
    h = jnp.dot(x_ref[...], w12_ref[...],
                preferred_element_type=jnp.float32) + b12_ref[...]
    # Dropout(0.2): identity in eval mode.
    # TODO(synk): training-mode dropout (random mask + 1/(1-p) scale via
    # pltpu.prng_random_bits) not emitted.
    # ReLU
    h = jnp.maximum(h, 0.0)
    # Linear(10, 1)
    o_ref[...] = jnp.dot(h, w3_ref[...],
                         preferred_element_type=jnp.float32) + b3_ref[...]


def mlp_forward(x, w1, b1, w2, b2, w3, b3):
    # Fuse the back-to-back Linear layers outside the kernel (valid because
    # there is no activation between them and Dropout is identity in eval).
    w12 = w1 @ w2                      # (n_inputs, 10)
    b12 = b1 @ w2 + b2                 # (1, 10)

    B = x.shape[0]
    vmem = pl.BlockSpec(memory_space=pltpu.MemorySpace.VMEM)
    return pl.pallas_call(
        mlp_kernel,
        out_shape=jax.ShapeDtypeStruct((B, 1), jnp.float32),
        in_specs=[vmem, vmem, vmem, vmem, vmem],
        out_specs=vmem,
    )(x, w12, b12, w3, b3)


def init_linear(key, fan_in, fan_out):
    # Mimic torch.nn.Linear default init: U(-1/sqrt(fan_in), 1/sqrt(fan_in)).
    kw, kb = jax.random.split(key)
    bound = 1.0 / jnp.sqrt(jnp.float32(fan_in))
    w = jax.random.uniform(kw, (fan_in, fan_out), jnp.float32, -bound, bound)
    b = jax.random.uniform(kb, (1, fan_out), jnp.float32, -bound, bound)
    return w, b


if __name__ == "__main__":
    n_inputs = 32
    batch = 8

    key = jax.random.PRNGKey(0)
    kx, k1, k2, k3 = jax.random.split(key, 4)

    x = jax.random.normal(kx, (batch, n_inputs), jnp.float32)
    w1, b1 = init_linear(k1, n_inputs, 20)
    w2, b2 = init_linear(k2, 20, 10)
    w3, b3 = init_linear(k3, 10, 1)

    out = jax.jit(mlp_forward)(x, w1, b1, w2, b2, w3, b3)
    out = jax.block_until_ready(out)

    # Reference check in plain JAX (unfused math, eval-mode dropout = identity).
    ref = x @ w1 + b1
    ref = ref @ w2 + b2
    ref = jnp.maximum(ref, 0.0)
    ref = ref @ w3 + b3

    assert out.shape == (batch, 1)
    assert jnp.allclose(out, ref, atol=1e-5, rtol=1e-5)

    print("KERNEL_OK")
</pallas_src>

<mosaic_0001>
module attributes {stable_mosaic.version = 11 : i64} {
  func.func @mlp_kernel(%arg0: memref<8x32xf32, #tpu.memory_space<vmem>>, %arg1: memref<32x10xf32, #tpu.memory_space<vmem>>, %arg2: memref<1x10xf32, #tpu.memory_space<vmem>>, %arg3: memref<10x1xf32, #tpu.memory_space<vmem>>, %arg4: memref<1x1xf32, #tpu.memory_space<vmem>>, %arg5: memref<8x1xf32, #tpu.memory_space<vmem>>) attributes {dimension_semantics = [], scalar_prefetch = 0 : i64, scratch_operands = 0 : i64, tpu.core_type = #tpu.core_type<tc>} {
    %c0 = arith.constant 0 : index
    %c0_0 = arith.constant 0 : index
    %0 = vector.load %arg0[%c0, %c0_0] : memref<8x32xf32, #tpu.memory_space<vmem>>, vector<8x32xf32>
    %c0_1 = arith.constant 0 : index
    %c0_2 = arith.constant 0 : index
    %1 = vector.load %arg1[%c0_1, %c0_2] : memref<32x10xf32, #tpu.memory_space<vmem>>, vector<32x10xf32>
    %cst = arith.constant dense<0.000000e+00> : vector<8x10xf32>
    %2 = tpu.matmul %0, %1, %cst {dimension_numbers = #tpu.dot_dimension_numbers<[1], [0], [0], [1], [0, 0, 1, 1], [], []>} : vector<8x32xf32>, vector<32x10xf32>, vector<8x10xf32> -> vector<8x10xf32>
    %c0_3 = arith.constant 0 : index
    %c0_4 = arith.constant 0 : index
    %3 = vector.load %arg2[%c0_3, %c0_4] : memref<1x10xf32, #tpu.memory_space<vmem>>, vector<1x10xf32>
    %4 = vector.broadcast %3 : vector<1x10xf32> to vector<8x10xf32>
    %5 = arith.addf %2, %4 : vector<8x10xf32>
    %cst_5 = arith.constant 0.000000e+00 : f32
    %6 = vector.broadcast %cst_5 : f32 to vector<8x10xf32>
    %7 = arith.maximumf %5, %6 : vector<8x10xf32>
    %c0_6 = arith.constant 0 : index
    %c0_7 = arith.constant 0 : index
    %8 = vector.load %arg3[%c0_6, %c0_7] : memref<10x1xf32, #tpu.memory_space<vmem>>, vector<10x1xf32>
    %cst_8 = arith.constant dense<0.000000e+00> : vector<8x1xf32>
    %9 = tpu.matmul %7, %8, %cst_8 {dimension_numbers = #tpu.dot_dimension_numbers<[1], [0], [0], [1], [0, 0, 1, 1], [], []>} : vector<8x10xf32>, vector<10x1xf32>, vector<8x1xf32> -> vector<8x1xf32>
    %c0_9 = arith.constant 0 : index
    %c0_10 = arith.constant 0 : index
    %10 = vector.load %arg4[%c0_9, %c0_10] : memref<1x1xf32, #tpu.memory_space<vmem>>, vector<1x1xf32>
    %11 = vector.broadcast %10 : vector<1x1xf32> to vector<8x1xf32>
    %12 = arith.addf %9, %11 : vector<8x1xf32>
    %c0_11 = arith.constant 0 : index
    %c0_12 = arith.constant 0 : index
    %13 = vector.load %arg5[%c0_11, %c0_12] : memref<8x1xf32, #tpu.memory_space<vmem>>, vector<8x1xf32>
    tpu.vector_store %arg5[%c0_11, %c0_12], %12 {strides = array<i32>} : memref<8x1xf32, #tpu.memory_space<vmem>>, vector<8x1xf32>,
    return
  }
}

</mosaic_0001>

<llo_original>
// kernel: mlp_forward.1
$region0: #{mlp_forward.1}
  #allocation0 [shape = 'u32[]', space=smem, size = 0x4, offset = 0x4, fixed_abs, tag = 'smem constant byte address 0x4 - core index']
  #allocation1 [shape = 'u32[144,128]{1,0:T(1,128)}', space=vmem, size = 0x12000, scoped, tag = 'internal scratch']
  #allocation2 [shape = 'f32[1,1]{1,0:T(1,128)S(1)}', space=vmem, size = 0x200, scoped, tag = 'scoped memory for mlp_forward.1']
  %s0 = inlined_call_operand.vmem [shape: f32[8,32], index: 0, kind: input, shape index: {}]
  %s1 = inlined_call_operand.vmem [shape: f32[32,10], index: 1, kind: input, shape index: {}]
  %s2 = inlined_call_operand.vmem [shape: f32[1,10], index: 2, kind: input, shape index: {}]
  %s3 = inlined_call_operand.vmem [shape: f32[10,1], index: 3, kind: input, shape index: {}]
  %s4 = inlined_call_operand.<no memory space> [shape: f32[1,1], index: 4, kind: input, shape index: {}]
  %s5 = inlined_call_operand.vmem [shape: f32[8,1], index: 5, kind: output, shape index: {}]
  %s6 = sld [smem:[#allocation0]]
  $region30: #{mlp_forward.1} parent=0
    _
  %s8 = ssub.s32 1, %s6
  %s9 = scalar_select 0, %s8, %s6
  %v10 = vstv %s4
  %11 = vst [vmem:[#allocation2] sm:$0x1] %v10
  // Predicated region
  $region2: #{mlp_forward.1} parent=0 // pred_check
    _
  $region3: #{mlp_forward.1} parent=0 // pred_check_branch
    %13 = sbr.rel (0) target = $region5
  $region4: #{mlp_forward.1} parent=0 // pred_region
    _
  $region5: #{mlp_forward.1} parent=0 // pred_fallthru
    _
  // Predicated region
  $region6: #{mlp_forward.1} parent=0 // pred_check
    _
  $region7: #{mlp_forward.1} parent=0 // pred_check_branch
    %15 = sbr.rel (0) target = $region9
  $region8: #{mlp_forward.1} parent=0 // pred_region
    _
  $region9: #{mlp_forward.1} parent=0 // pred_fallthru
    _
  // Predicated region
  $region10: #{mlp_forward.1} parent=0 // pred_check
    _
  $region11: #{mlp_forward.1} parent=0 // pred_check_branch
    %17 = sbr.rel (0) target = $region13
  $region12: #{mlp_forward.1} parent=0 // pred_region
    _
  $region13: #{mlp_forward.1} parent=0 // pred_fallthru
    _
  // Predicated region
  $region14: #{mlp_forward.1} parent=0 // pred_check
    _
  $region15: #{mlp_forward.1} parent=0 // pred_check_branch
    %19 = sbr.rel (0) target = $region17
  $region16: #{mlp_forward.1} parent=0 // pred_region
    _
  $region17: #{mlp_forward.1} parent=0 // pred_fallthru
    _
  // Predicated region
  $region18: #{mlp_forward.1} parent=0 // pred_check
    _
  $region19: #{mlp_forward.1} parent=0 // pred_check_branch
    %21 = sbr.rel (0) target = $region21
  $region20: #{mlp_forward.1} parent=0 // pred_region
    _
  $region21: #{mlp_forward.1} parent=0 // pred_fallthru
    _
  %v22 = vld [vmem:[%s0] sm:$0xff]
  %v23 = vld [vmem:[%s1] sm:$0xff]
  %v24 = vld [vmem:[%s1 + $0x8] sm:$0xff]
  %v25 = vld [vmem:[%s1 + $0x10] sm:$0xff]
  %v26 = vld [vmem:[%s1 + $0x18] sm:$0xff]
  %v27 = vld [vmem:[%s2] sm:$0x1]
  %v29 = vlaneseq
  %v30 = vshrl.u32 %v29, 7
  %v31 = vsub.s32 0, %v30
  %v32 = vrot.slane %v27, %v31
  %vm34 = vcmask 261120
  %v36 = vsel %vm34, %v22, 0
  %38 = vmatprep.subr.mxu0 0.0
  %39 = vmatpush1.msra.mxu0 %v23
  %40 = vmatprep.subr.mxu0 0.0
  %41 = vmatpush1.msra.mxu0 %v24
  %42 = vmatprep.subr.mxu0 0.0
  %43 = vmatpush1.msra.mxu0 %v25
  %44 = vmatprep.subr.mxu0 0.0
  %45 = vmatpush1.msra.mxu0 %v26
  %46 = vmatprep.subr.mxu0 0.0
  %47 = vmatpush1.msra.mxu0 0.0
  %48 = vmatprep.subr.mxu0 0.0
  %49 = vmatpush1.msra.mxu0 0.0
  %50 = vmatprep.subr.mxu0 0.0
  %51 = vmatpush1.msra.mxu0 0.0
  %52 = vmatprep.subr.mxu0 0.0
  %53 = vmatpush1.msra.mxu0 0.0
  %54 = vmatprep.subr.mxu0 0.0
  %55 = vmatpush1.msra.mxu0 0.0
  %56 = vmatprep.subr.mxu0 0.0
  %57 = vmatpush1.msra.mxu0 0.0
  %58 = vmatprep.subr.mxu0 0.0
  %59 = vmatpush1.msra.mxu0 0.0
  %60 = vmatprep.subr.mxu0 0.0
  %61 = vmatpush1.msra.mxu0 0.0
  %62 = vmatprep.subr.mxu0 0.0
  %63 = vmatpush1.msra.mxu0 0.0
  %64 = vmatprep.subr.mxu0 0.0
  %65 = vmatpush1.msra.mxu0 0.0
  %66 = vmatprep.subr.mxu0 0.0
  %67 = vmatpush1.msra.mxu0 0.0
  %68 = vmatprep.subr.mxu0 0.0
  %69 = vmatpush1.msra.mxu0 0.0
  %70 = vmatprep.subr.mxu0 0.0
  %71 = vmatpush1.msra.mxu0 0.0
  %72 = vmatprep.subr.mxu0 0.0
  %73 = vmatpush1.msra.mxu0 0.0
  %74 = vmatprep.subr.mxu0 0.0
  %75 = vmatpush1.msra.mxu0 0.0
  %76 = vmatprep.subr.mxu0 0.0
  %77 = vmatpush1.msra.mxu0 0.0
  %78 = vmatprep.subr.mxu0 0.0
  %79 = vmatpush1.msra.mxu0 0.0
  %80 = vmatprep.subr.mxu0 0.0
  %81 = vmatpush1.msra.mxu0 0.0
  %82 = vmatprep.subr.mxu0 0.0
  %83 = vmatpush1.msra.mxu0 0.0
  %84 = vmatprep.subr.mxu0 0.0
  %85 = vmatpush1.msra.mxu0 0.0
  %86 = vmatprep.subr.mxu0 0.0
  %87 = vmatpush1.msra.mxu0 0.0
  %88 = vmatprep.subr.mxu0 0.0
  %89 = vmatpush1.msra.mxu0 0.0
  %90 = vmatprep.subr.mxu0 0.0
  %91 = vmatpush1.msra.mxu0 0.0
  %92 = vmatprep.subr.mxu0 0.0
  %93 = vmatpush1.msra.mxu0 0.0
  %94 = vmatprep.subr.mxu0 0.0
  %95 = vmatpush1.msra.mxu0 0.0
  %96 = vmatprep.subr.mxu0 0.0
  %97 = vmatpush1.msra.mxu0 0.0
  %98 = vmatprep.subr.mxu0 0.0
  %99 = vmatpush1.msra.mxu0 0.0
  %100 = vmatprep.subr.mxu0 0.0
  %101 = vmatpush1.msra.mxu0 0.0
  %102 = vmatprep.mubr.f32.mxu0 0.0
  %103 = vmatmul.mubr.f32.gmra.mrb[0].mxu0 %v36
  %v104 = vpop.f32.mrb[0].mxu0
  %v105 = vadd.f32 %v32, %v104
  %v106 = vpop.f32.mrb[0].mxu0
  %107 = vdwg.mxu0
  %v108 = vmax.f32 %v105, 0.0
  %v109 = vld [vmem:[%s3] sm:$0xff]
  %v110 = vld [vmem:[%s3 + $0x8] sm:$0x3]
  %v111 = vld [vmem:[#allocation2] sm:$0x1]
  %v113 = vlaneseq
  %v114 = vshrl.u32 %v113, 7
  %v115 = vsub.s32 0, %v114
  %v116 = vrot.slane %v111, %v115
  %vm118 = vcmask 80896
  %v120 = vsel %vm118, %v108, 0
  %vm122 = vcmask 1041408
  %v124 = vsel %vm122, %v110, 0
  %126 = vmatprep.subr.mxu0 0.0
  %127 = vmatpush1.msra.mxu0 %v109
  %128 = vmatprep.subr.mxu0 0.0
  %129 = vmatpush1.msra.mxu0 %v124
  %130 = vmatprep.subr.mxu0 0.0
  %131 = vmatpush1.msra.mxu0 0.0
  %132 = vmatprep.subr.mxu0 0.0
  %133 = vmatpush1.msra.mxu0 0.0
  %134 = vmatprep.subr.mxu0 0.0
  %135 = vmatpush1.msra.mxu0 0.0
  %136 = vmatprep.subr.mxu0 0.0
  %137 = vmatpush1.msra.mxu0 0.0
  %138 = vmatprep.subr.mxu0 0.0
  %139 = vmatpush1.msra.mxu0 0.0
  %140 = vmatprep.subr.mxu0 0.0
  %141 = vmatpush1.msra.mxu0 0.0
  %142 = vmatprep.subr.mxu0 0.0
  %143 = vmatpush1.msra.mxu0 0.0
  %144 = vmatprep.subr.mxu0 0.0
  %145 = vmatpush1.msra.mxu0 0.0
  %146 = vmatprep.subr.mxu0 0.0
  %147 = vmatpush1.msra.mxu0 0.0
  %148 = vmatprep.subr.mxu0 0.0
  %149 = vmatpush1.msra.mxu0 0.0
  %150 = vmatprep.subr.mxu0 0.0
  %151 = vmatpush1.msra.mxu0 0.0
  %152 = vmatprep.subr.mxu0 0.0
  %153 = vmatpush1.msra.mxu0 0.0
  %154 = vmatprep.subr.mxu0 0.0
  %155 = vmatpush1.msra.mxu0 0.0
  %156 = vmatprep.subr.mxu0 0.0
  %157 = vmatpush1.msra.mxu0 0.0
  %158 = vmatprep.subr.mxu0 0.0
  %159 = vmatpush1.msra.mxu0 0.0
  %160 = vmatprep.subr.mxu0 0.0
  %161 = vmatpush1.msra.mxu0 0.0
  %162 = vmatprep.subr.mxu0 0.0
  %163 = vmatpush1.msra.mxu0 0.0
  %164 = vmatprep.subr.mxu0 0.0
  %165 = vmatpush1.msra.mxu0 0.0
  %166 = vmatprep.subr.mxu0 0.0
  %167 = vmatpush1.msra.mxu0 0.0
  %168 = vmatprep.subr.mxu0 0.0
  %169 = vmatpush1.msra.mxu0 0.0
  %170 = vmatprep.subr.mxu0 0.0
  %171 = vmatpush1.msra.mxu0 0.0
  %172 = vmatprep.subr.mxu0 0.0
  %173 = vmatpush1.msra.mxu0 0.0
  %174 = vmatprep.subr.mxu0 0.0
  %175 = vmatpush1.msra.mxu0 0.0
  %176 = vmatprep.subr.mxu0 0.0
  %177 = vmatpush1.msra.mxu0 0.0
  %178 = vmatprep.subr.mxu0 0.0
  %179 = vmatpush1.msra.mxu0 0.0
  %180 = vmatprep.subr.mxu0 0.0
  %181 = vmatpush1.msra.mxu0 0.0
  %182 = vmatprep.subr.mxu0 0.0
  %183 = vmatpush1.msra.mxu0 0.0
  %184 = vmatprep.subr.mxu0 0.0
  %185 = vmatpush1.msra.mxu0 0.0
  %186 = vmatprep.subr.mxu0 0.0
  %187 = vmatpush1.msra.mxu0 0.0
  %188 = vmatprep.subr.mxu0 0.0
  %189 = vmatpush1.msra.mxu0 0.0
  %190 = vmatprep.mubr.f32.mxu0 0.0
  %191 = vmatmul.mubr.f32.gmra.mrb[0].mxu0 %v120
  %v192 = vpop.f32.mrb[0].mxu0
  %v193 = vadd.f32 %v116, %v192
  %v194 = vpop.f32.mrb[0].mxu0
  %195 = vdwg.mxu0
  %vm196 = vcmask 7168
  %197 = vst.msk [vmem:[%s5] sm:$0xff] %vm196, %v193
  // Predicated region
  $region22: #{mlp_forward.1} parent=0 // pred_check
    _
  $region23: #{mlp_forward.1} parent=0 // pred_check_branch
    %199 = sbr.rel (0) target = $region25
  $region24: #{mlp_forward.1} parent=0 // pred_region
    _
  $region25: #{mlp_forward.1} parent=0 // pred_fallthru
    _
  // Predicated region
  $region26: #{mlp_forward.1} parent=0 // pred_check
    _
  $region27: #{mlp_forward.1} parent=0 // pred_check_branch
    %201 = sbr.rel (0) target = $region29
  $region28: #{mlp_forward.1} parent=0 // pred_region
    _
  $region29: #{mlp_forward.1} parent=0 // pred_fallthru
    _

</llo_original>
